<compile_context>
chip_gen: v6e
topology: v6e:2x2x1
jax: 0.10.0
libtpu: 0.0.40
codegen_flags: <defaults>
</compile_context>

<pallas_src>
import math

import jax
import jax.numpy as jnp
from jax.experimental import pallas as pl
from jax.experimental.pallas import tpu as pltpu

_LANES = 128
_SUBLANES = 8
_TARGET_TILE_BYTES = 512 * 1024  # per-grid-step output tile target


def _round_up(n: int, m: int) -> int:
    return ((n + m - 1) // m) * m


def _cdiv(a: int, b: int) -> int:
    return (a + b - 1) // b


def _posemb_kernel(x_ref, w_ref, p_ref, o_ref):
    # Pure elementwise, single full-width store.
    # x_ref: (TR, Wp) packed timesteps, w_ref/p_ref: (1, Wp) resident rows.
    # phase row is 0 on the "sin" lanes and pi/2 on the "cos" lanes
    # (sin(theta + pi/2) == cos(theta)), so one EUP sin pass does both halves.
    x = x_ref[...].astype(jnp.float32)
    o_ref[...] = jnp.sin(x * w_ref[...] + p_ref[...]).astype(o_ref.dtype)


def random_or_learned_sinusoidal_pos_emb(x, weights):
    """x: (B,) timesteps; weights: (half_dim,) frequency parameters.

    Returns (B, 2*half_dim + 1) with columns [x, sin(f), cos(f)] where
    f = x[:, None] * weights[None, :] * 2*pi  (matches the torch module)."""
    assert x.ndim == 1 and weights.ndim == 1
    B = x.shape[0]
    H = weights.shape[0]
    W = 2 * H

    # Integer timesteps must still produce float embeddings.
    out_dtype = x.dtype if jnp.issubdtype(x.dtype, jnp.floating) else jnp.float32

    # ---- lane packing: k batch rows per output row so rows are 128-lane dense
    if W % _LANES == 0:
        k = 1
    elif _LANES % W == 0:
        k = _LANES // W
    else:
        k = 1  # irregular width: block spans the full (non-128-mult) row
    Wp = k * W

    # ---- resident frequency / phase rows (2*pi folded once, tiled k times)
    w32 = weights.astype(jnp.float32) * (2.0 * math.pi)
    w_row = jnp.tile(jnp.concatenate([w32, w32]), k).reshape(1, Wp)
    p_row = jnp.tile(
        jnp.concatenate(
            [jnp.zeros((H,), jnp.float32), jnp.full((H,), 0.5 * math.pi, jnp.float32)]
        ),
        k,
    ).reshape(1, Wp)

    # ---- row tiling of the packed (n_rows, Wp) layout
    n_rows = _cdiv(B, k)
    row_bytes = Wp * jnp.dtype(out_dtype).itemsize
    n_steps = max(1, _cdiv(n_rows * row_bytes, _TARGET_TILE_BYTES))
    if n_rows >= 2 * _SUBLANES:
        n_steps = max(n_steps, 2)  # >=2 grid steps: v7x megacore gets both TCs
    TR = _round_up(_cdiv(n_rows, n_steps), _SUBLANES)
    R_pad = _round_up(n_rows, TR)
    B_pad = R_pad * k

    # ---- pre-replicate x into the packed lane-dense layout
    x32 = x.astype(jnp.float32)
    if B_pad != B:
        x32 = jnp.pad(x32, (0, B_pad - B))
    x_packed = jnp.broadcast_to(x32[:, None], (B_pad, W)).reshape(R_pad, Wp)

    sincos = pl.pallas_call(
        _posemb_kernel,
        out_shape=jax.ShapeDtypeStruct((R_pad, Wp), out_dtype),
        grid=(R_pad // TR,),
        in_specs=[
            pl.BlockSpec((TR, Wp), lambda i: (i, 0)),  # packed x rows, tiled
            pl.BlockSpec((1, Wp), lambda i: (0, 0)),   # frequencies (resident)
            pl.BlockSpec((1, Wp), lambda i: (0, 0)),   # phase row   (resident)
        ],
        out_specs=pl.BlockSpec((TR, Wp), lambda i: (i, 0)),
        compiler_params=pltpu.CompilerParams(
            dimension_semantics=("parallel",),  # batch rows are independent
        ),
    )(x_packed, w_row, p_row)

    # Packed (R_pad, k*W) row-major == (B_pad, W) row-major: reshape is free.
    sincos = sincos.reshape(B_pad, W)[:B]

    # Trivial single x column concatenated by XLA outside the kernel so the
    # kernel output stays lane-dense.
    return jnp.concatenate([x.reshape(B, 1).astype(out_dtype), sincos], axis=-1)


def _reference(x, weights):
    xf = x[:, None].astype(jnp.float32)
    freqs = xf * weights[None, :].astype(jnp.float32) * 2.0 * math.pi
    return jnp.concatenate([xf, jnp.sin(freqs), jnp.cos(freqs)], axis=-1)


if __name__ == "__main__":
    key = jax.random.PRNGKey(0)
    k_x, k_w = jax.random.split(key)

    B = 8       # batch of diffusion timesteps
    dim = 32    # embedding dim (must be even)
    half_dim = dim // 2

    # "learned/random" frequency weights (nn.Parameter(torch.randn(half_dim)))
    weights = jax.random.normal(k_w, (half_dim,), dtype=jnp.float32)
    # Continuous-time diffusion timesteps in [0, 1) (crowsonkb v-diffusion
    # parameterization the module follows); keeps sin/cos arguments in a range
    # where f32 comparison at 1e-4 tolerance is meaningful.
    x = jax.random.uniform(k_x, (B,), dtype=jnp.float32)

    out = random_or_learned_sinusoidal_pos_emb(x, weights)
    out = jax.block_until_ready(out)

    ref = _reference(x, weights)
    assert out.shape == (B, dim + 1), out.shape
    assert jnp.allclose(out, ref, atol=1e-4, rtol=1e-4), float(
        jnp.max(jnp.abs(out - ref))
    )

    print("KERNEL_OK")
</pallas_src>

<mosaic_0001>
module attributes {stable_mosaic.version = 11 : i64} {
  func.func @_posemb_kernel(%arg0: i32, %arg1: memref<8x128xf32, #tpu.memory_space<vmem>>, %arg2: memref<1x128xf32, #tpu.memory_space<vmem>>, %arg3: memref<1x128xf32, #tpu.memory_space<vmem>>, %arg4: memref<8x128xf32, #tpu.memory_space<vmem>>) attributes {dimension_semantics = [#tpu.dimension_semantics<parallel>], iteration_bounds = array<i64: 1>, scalar_prefetch = 0 : i64, scratch_operands = 0 : i64, tpu.core_type = #tpu.core_type<tc>, window_params = [{transform_indices = @transform_0, window_bounds = array<i64: 8, 128>}, {pipeline_mode = #tpu.pipeline_mode<synchronous>, transform_indices = @transform_1, window_bounds = array<i64: 1, 128>}, {pipeline_mode = #tpu.pipeline_mode<synchronous>, transform_indices = @transform_2, window_bounds = array<i64: 1, 128>}, {transform_indices = @transform_3, window_bounds = array<i64: 8, 128>}]} {
    %c0 = arith.constant 0 : index
    %c0_0 = arith.constant 0 : index
    %0 = vector.load %arg1[%c0, %c0_0] : memref<8x128xf32, #tpu.memory_space<vmem>>, vector<8x128xf32>
    %c0_1 = arith.constant 0 : index
    %c0_2 = arith.constant 0 : index
    %1 = vector.load %arg2[%c0_1, %c0_2] : memref<1x128xf32, #tpu.memory_space<vmem>>, vector<1x128xf32>
    %2 = vector.broadcast %1 : vector<1x128xf32> to vector<8x128xf32>
    %3 = arith.mulf %0, %2 : vector<8x128xf32>
    %c0_3 = arith.constant 0 : index
    %c0_4 = arith.constant 0 : index
    %4 = vector.load %arg3[%c0_3, %c0_4] : memref<1x128xf32, #tpu.memory_space<vmem>>, vector<1x128xf32>
    %5 = vector.broadcast %4 : vector<1x128xf32> to vector<8x128xf32>
    %6 = arith.addf %3, %5 : vector<8x128xf32>
    %7 = math.sin %6 : vector<8x128xf32>
    %c0_5 = arith.constant 0 : index
    %c0_6 = arith.constant 0 : index
    %8 = vector.load %arg4[%c0_5, %c0_6] : memref<8x128xf32, #tpu.memory_space<vmem>>, vector<8x128xf32>
    tpu.vector_store %arg4[%c0_5, %c0_6], %7 {strides = array<i32>} : memref<8x128xf32, #tpu.memory_space<vmem>>, vector<8x128xf32>,
    return
  }
  func.func @transform_0(%arg0: i32) -> (i32, i32) {
    %c0_i32 = arith.constant 0 : i32
    %c0_i32_0 = arith.constant 0 : i32
    return %arg0, %c0_i32 : i32, i32
  }
  func.func @transform_1(%arg0: i32) -> (i32, i32) {
    %c0_i32 = arith.constant 0 : i32
    %c0_i32_0 = arith.constant 0 : i32
    %c0_i32_1 = arith.constant 0 : i32
    return %c0_i32, %c0_i32_0 : i32, i32
  }
  func.func @transform_2(%arg0: i32) -> (i32, i32) {
    %c0_i32 = arith.constant 0 : i32
    %c0_i32_0 = arith.constant 0 : i32
    %c0_i32_1 = arith.constant 0 : i32
    return %c0_i32, %c0_i32_0 : i32, i32
  }
  func.func @transform_3(%arg0: i32) -> (i32, i32) {
    %c0_i32 = arith.constant 0 : i32
    %c0_i32_0 = arith.constant 0 : i32
    return %arg0, %c0_i32 : i32, i32
  }
}

</mosaic_0001>

<llo_original>
// kernel: tpu_custom_call.1
$region0: #{tpu_custom_call.1}
  #allocation0 [shape = 'u32[]', space=smem, size = 0x4, offset = 0x4, fixed_abs, tag = 'smem constant byte address 0x4 - core index']
  #allocation1 [shape = 'u32[144,128]{1,0:T(1,128)}', space=vmem, size = 0x12000, scoped, tag = 'internal scratch']
  %s0 = inlined_call_operand.hbm [shape: f32[8,128], index: 0, kind: input, shape index: {}]
  %s1 = inlined_call_operand.vmem [shape: f32[1,128], index: 1, kind: input, shape index: {}]
  %s2 = inlined_call_operand.vmem [shape: f32[1,128], index: 2, kind: input, shape index: {}]
  %s3 = inlined_call_operand.hbm [shape: f32[8,128], index: 3, kind: output, shape index: {}]
  %s4 = sld [smem:[#allocation0]]
  $region26: #{tpu_custom_call.1} parent=0
    _
  %s6 = ssub.s32 1, %s4
  %s7 = scalar_select 0, %s6, %s4
  $region1: #{tpu_custom_call.1} parent=0
    #allocation2 [shape = 'u8[4096]{0}', space=vmem, size = 0x1000, scoped, tag = 'input window, operand 0, single buffered']
    #allocation3 [shape = 's32[1]{0}', space=sflag, size = 0x4, scoped, tag = 'scoped memory for tpu_custom_call.1']
    #allocation4 [shape = 's32[1]{0}', space=sflag, size = 0x4, scoped, tag = 'scoped memory for tpu_custom_call.1']
    #allocation5 [shape = 'u8[4096]{0}', space=vmem, size = 0x1000, scoped, tag = 'output window, operand 0, single buffered']
    %8 = vsyncpa [#allocation3], 0
    %9 = vsyncpa [#allocation4], 0
    // Predicated region
    $region2: #{tpu_custom_call.1} parent=1 // pred_check
      _
    $region3: #{tpu_custom_call.1} parent=1 // pred_check_branch
      %11 = sbr.rel (0) target = $region5
    $region4: #{tpu_custom_call.1} parent=1 // pred_region
      %s13 = ssub.s32 128, 128
      %14 = vsyncadd [#allocation3], %s13
      %s16 = sshll.u32 [#allocation2], 4
      %s17 = int_to_ptr.vmem [resolvable:$true] %s16
      %19 = dma.hbm_to_vmem [thread:$0]  %s0, 128, %s17, [#allocation3]
    $region5: #{tpu_custom_call.1} parent=1 // pred_fallthru
      _
    // Predicated region
    $region6: #{tpu_custom_call.1} parent=1 // pred_check
      _
    $region7: #{tpu_custom_call.1} parent=1 // pred_check_branch
      %21 = sbr.rel (0) target = $region9
    $region8: #{tpu_custom_call.1} parent=1 // pred_region
      _
    $region9: #{tpu_custom_call.1} parent=1 // pred_fallthru
      _
    // Predicated region
    $region10: #{tpu_custom_call.1} parent=1 // pred_check
      _
    $region11: #{tpu_custom_call.1} parent=1 // pred_check_branch
      %23 = sbr.rel (0) target = $region13
    $region12: #{tpu_custom_call.1} parent=1 // pred_region
      _
    $region13: #{tpu_custom_call.1} parent=1 // pred_fallthru
      _
    // Predicated region
    $region14: #{tpu_custom_call.1} parent=1 // pred_check
      _
    $region15: #{tpu_custom_call.1} parent=1 // pred_check_branch
      %25 = sbr.rel (0) target = $region17
    $region16: #{tpu_custom_call.1} parent=1 // pred_region
      %26 = dma.done [#allocation3], 128
    $region17: #{tpu_custom_call.1} parent=1 // pred_fallthru
      _
    %v27 = vld [vmem:[#allocation2] sm:$0xff]
    %v28 = vld [vmem:[%s1] sm:$0x1]
    %v30 = vlaneseq
    %v31 = vshrl.u32 %v30, 7
    %v32 = vsub.s32 0, %v31
    %v33 = vrot.slane %v28, %v32
    %v35 = vmul.f32 %v27, %v33
    %v36 = vld [vmem:[%s2] sm:$0x1]
    %v38 = vlaneseq
    %v39 = vshrl.u32 %v38, 7
    %v40 = vsub.s32 0, %v39
    %v41 = vrot.slane %v36, %v40
    %v43 = vadd.f32 %v35, %v41
    %v44 = vand.u32 2147483647, %v43
    %vm45 = vcmp.le.f32.partialorder %v44, 0.7853982
    %vm46 = vcmp.lt.s32.totalorder %v43, 0
    %v47 = vand.u32 %v43, 2139095040
    %v48 = vshrl.u32 %v47, 23
    %v49 = vsub.s32 %v48, 127
    %v50 = vand.u32 2147483647, %v43
    %v51 = vand.u32 %v50, 8388607
    %v52 = vor.u32 %v51, 8388608
    %v53 = vsub.s32 0, %v52
    %v54 = vadd.s32 %v49, 1
    %vm55 = vcmp.gt.s32.totalorder %v54, 0
    %v56 = vsel %vm55, %v54, 0
    %v57 = vshrl.u32 %v56, 5
    %v58 = vand.u32 %v56, 31
    %v59 = vsub.s32 32, %v58
    %v60 = vshrl.u32 683565275, %v59
    %v61 = vshll.u32 683565275, %v58
    %v62 = vshrl.u32 2475754826, %v59
    %v63 = vor.u32 %v61, %v62
    %v64 = vshll.u32 2475754826, %v58
    %v65 = vshrl.u32 2131351028, %v59
    %v66 = vor.u32 %v64, %v65
    %v67 = vshll.u32 2131351028, %v58
    %v68 = vshrl.u32 2102212464, %v59
    %v69 = vor.u32 %v67, %v68
    %v70 = vshll.u32 2102212464, %v58
    %v71 = vshrl.u32 920167782, %v59
    %v72 = vor.u32 %v70, %v71
    %v73 = vshll.u32 920167782, %v58
    %v74 = vshrl.u32 1326507024, %v59
    %v75 = vor.u32 %v73, %v74
    %vm76 = vcmp.lt.s32.totalorder %v57, 1
    %vm77 = vcmp.lt.s32.totalorder %v57, 2
    %vm78 = vcmp.lt.s32.totalorder %v57, 3
    %vm79 = vcmp.lt.s32.totalorder %v57, 4
    %v80 = vsel %vm76, %v60, %v63
    %v81 = vsel %vm79, %v69, 2102212464
    %v82 = vsel %vm78, %v66, %v81
    %v83 = vsel %vm77, %v80, %v82
    %v84 = vsel %vm76, %v63, %v66
    %v85 = vsel %vm79, %v72, 920167782
    %v86 = vsel %vm78, %v69, %v85
    %v87 = vsel %vm77, %v84, %v86
    %v88 = vsel %vm76, %v66, %v69
    %v89 = vsel %vm79, %v75, 1326507024
    %v90 = vsel %vm78, %v72, %v89
    %v91 = vsel %vm77, %v88, %v90
    %v92 = vshll.u32 %v52, 8
    %v93 = vmul.u32.u64.compose %v92, %v91
    %v94 = vextract.low.u32 %v93
    %v95 = vextract.high.u32 %v93
    %v96 = vmul.u32.u64.compose %v92, %v87
    %v97 = vextract.low.u32 %v96
    %v98 = vextract.high.u32 %v96
    %v99 = vmul.u32 %v92, %v83
    %v100 = vadd.s32 %v95, %v97
    %vm101 = vc.u32 %v95, %v97
    %v102 = vadd.s32 %v98, 1
    %v103 = vsel %vm101, %v102, %v98
    %v104 = vadd.s32 %v99, %v103
    %v105 = vadd.s32 %v104, 536870912
    %v106 = vshrl.u32 %v105, 30
    %v107 = vshll.u32 %v106, 30
    %v108 = vsub.s32 %v104, %v107
    %vm109 = vcmp.lt.s32.totalorder %v108, 0
    %v110 = vsub.s32 0, %v108
    %v111 = vsel %vm109, %v110, %v108
    %v112 = vclz %v111
    %v113 = vsub.s32 %v112, 2
    %vm114 = vcmp.gt.s32.totalorder 0, %v113
    %v115 = vsel %vm114, 0, %v113
    %v116 = vsub.s32 32, %v115
    %v117 = vshll.u32 %v108, %v115
    %v118 = vshrl.u32 %v100, %v116
    %v119 = vor.u32 %v117, %v118
    %v120 = vsub.s32 4294967266, %v115
    %v121 = vadd.s32 %v120, 127
    %v122 = vshll.u32 %v121, 23
    %v123 = vor.u32 4788187, %v122
    %v124 = vand.u32 2147483647, %v123
    %v126 = vcvt.s32.f32 %v119
    %v127 = vmul.f32 %v126, %v124
    %v128 = vxor.u32 %v127, 2147483648
    %v129 = vsel %vm46, %v128, %v127
    %v130 = vsub.s32 4, %v106
    %v131 = vsel %vm46, %v130, %v106
    %v132 = vsel %vm45, %v43, %v129
    %v133 = vsel %vm45, 0, %v131
    %v134 = vcosq.f32.pop %v132
    %v135 = vsinq.f32.pop %v132
    %vm136 = vweird.f32 %v43
    %v137 = vadd.s32 %v133, 3
    %v138 = vand.u32 %v137, 3
    %vm139 = vcmp.lt.s32.totalorder %v138, 2
    %vm140 = vcmp.eq.s32.totalorder %v138, 0
    %v141 = vxor.u32 %v135, 2147483648
    %v142 = vsel %vm140, %v134, %v141
    %vm143 = vcmp.eq.s32.totalorder %v138, 2
    %v144 = vxor.u32 %v134, 2147483648
    %v145 = vsel %vm143, %v144, %v135
    %v146 = vsel %vm139, %v142, %v145
    %v147 = vsel %vm136, nan, %v146
    %148 = vst [vmem:[#allocation5] sm:$0xff] %v147
    // Predicated region
    $region18: #{tpu_custom_call.1} parent=1 // pred_check
      _
    $region19: #{tpu_custom_call.1} parent=1 // pred_check_branch
      %150 = sbr.rel (0) target = $region21
    $region20: #{tpu_custom_call.1} parent=1 // pred_region
      %s152 = ssub.s32 128, 128
      %153 = vsyncadd [#allocation4], %s152
      %s155 = sshll.u32 [#allocation5], 4
      %s156 = int_to_ptr.vmem [resolvable:$true] %s155
      %158 = dma.vmem_to_hbm [thread:$0]  %s156, 128, %s3, [#allocation4]
    $region21: #{tpu_custom_call.1} parent=1 // pred_fallthru
      _
    // Predicated region
    $region22: #{tpu_custom_call.1} parent=1 // pred_check
      _
    $region23: #{tpu_custom_call.1} parent=1 // pred_check_branch
      %160 = sbr.rel (0) target = $region25
    $region24: #{tpu_custom_call.1} parent=1 // pred_region
      %161 = dma.done [#allocation4], 128
    $region25: #{tpu_custom_call.1} parent=1 // pred_fallthru
      _
    %162 = vsyncpa [#allocation3], 1
    %163 = vsyncpa [#allocation4], 1

</llo_original>
